<compile_context>
chip_gen: v5e
topology: v5e:2x2
jax: 0.10.0
libtpu: 0.0.40
codegen_flags: <defaults>
</compile_context>

<pallas_src>
import functools
import math

import jax
import jax.numpy as jnp
from jax.experimental import pallas as pl
from jax.experimental.pallas import tpu as pltpu


def _rotary_kernel(tab_ref, out_ref, *, fold):
    # tab_ref : (2, width) f32 VMEM
    #   row 0: inv_freq concatenated to width `dim`, tiled `fold`x
    #   row 1: (lane // dim) * row0  -- lane-constant offset term, hoisted to wrapper
    # out_ref : (tile_rows, width)   -- each stored row packs `fold` sequence positions
    tile_rows, _ = out_ref.shape
    base = pl.program_id(0) * tile_rows * fold            # first seq position of this tile

    inv_row = tab_ref[0:1, :]                             # (1, width)
    off_row = tab_ref[1:2, :]                             # (1, width)

    row = jax.lax.broadcasted_iota(jnp.int32, (tile_rows, 1), 0)
    seq = (base + row * fold).astype(jnp.float32)         # int32 exact, cast once

    # Single lane-dense, full-width store.
    out_ref[...] = (seq * inv_row + off_row).astype(out_ref.dtype)


def _vmem_budget_bytes() -> int:
    """Total budget for the output double-buffer, per chip generation."""
    cap = None
    try:
        cap = pltpu.get_tpu_info().vmem_capacity_bytes
    except Exception:
        cap = None
    if cap:
        # ~1/4 of physical VMEM, clamped to [8, 24] MiB:
        #   v5e/v6e (128 MiB) -> 24 MiB, v7x (64 MiB per TC) -> 16 MiB.
        return int(max(8 << 20, min(cap // 4, 24 << 20)))
    try:
        kind = jax.devices()[0].device_kind.lower()
    except Exception:
        kind = ""
    if "v7" in kind:
        return 16 << 20          # 64 MiB physical / 32 MiB scoped: keep headroom
    if "v6" in kind:
        return 24 << 20
    if "v5" in kind:
        return 12 << 20
    return 8 << 20               # conservative fallback


def rotary_embedding(max_seq_len: int, dim: int, *, tile_rows: int | None = None,
                     dtype=jnp.float32):
    """Returns the (max_seq_len, dim) rotary frequency table, matching
    PyTorch RotaryEmbedding.forward(max_seq_len)."""
    assert dim % 2 == 0

    # Deterministic "parameter" (buffer) init — identical to torch __init__.
    inv_freq = 1.0 / (10000.0 ** (jnp.arange(0, dim, 2, dtype=jnp.float32) / dim))
    inv_full = jnp.concatenate([inv_freq, inv_freq])       # (dim,) == cat semantics

    # Lane-dense folding: pack `fold` sequence positions per stored row so the
    # stored width is a multiple of 128 lanes. Pad the sequence axis up to a
    # multiple of `fold` (sliced away after the reshape) so this always applies.
    fold = 1
    if dim % 128 != 0:
        fold = 128 // math.gcd(dim, 128)
    width = fold * dim                                      # multiple of 128
    padded_len = pl.cdiv(max_seq_len, fold) * fold
    n_rows = padded_len // fold

    inv_tiled = jnp.tile(inv_full, fold)                                  # (width,)
    lane_off = (jnp.arange(width, dtype=jnp.int32) // dim).astype(jnp.float32)
    tab = jnp.stack([inv_tiled, lane_off * inv_tiled]).astype(jnp.float32)  # (2, width)

    itemsize = jnp.dtype(dtype).itemsize
    pack = max(8, 32 // itemsize)                           # sublane packing granularity
    if tile_rows is None:
        budget = _vmem_budget_bytes()                       # output double-buffer budget
        tile_rows = budget // (2 * width * itemsize)
        tile_rows = max(pack, (tile_rows // pack) * pack)
    if tile_rows >= n_rows:
        if n_rows >= 2 * pack:
            # Split so the grid has >=2 steps: both v7x TensorCores stream stores.
            tile_rows = pl.cdiv(pl.cdiv(n_rows, 2), pack) * pack
        else:
            tile_rows = n_rows                              # full-extent block: always legal
    else:
        tile_rows = max(pack, (tile_rows // pack) * pack)

    grid = (pl.cdiv(n_rows, tile_rows),)                    # ragged last tile is masked

    # Explicit VMEM limit derived from the actual footprint (+ margin), so larger
    # tiles don't trip the per-generation scoped-VMEM defaults.
    vmem_limit = 2 * tile_rows * width * itemsize + 4 * width * 4 + (4 << 20)
    vmem_limit = int(min(max(vmem_limit, 8 << 20), 30 << 20))

    kernel = functools.partial(_rotary_kernel, fold=fold)

    out_folded = pl.pallas_call(
        kernel,
        out_shape=jax.ShapeDtypeStruct((n_rows, width), dtype),
        grid_spec=pltpu.PrefetchScalarGridSpec(
            num_scalar_prefetch=0,
            grid=grid,
            in_specs=[
                # tiny (2, width) table, same block for every grid step
                pl.BlockSpec((2, width), lambda i: (0, 0)),
            ],
            out_specs=pl.BlockSpec((tile_rows, width), lambda i: (i, 0)),
        ),
        compiler_params=pltpu.CompilerParams(
            dimension_semantics=("parallel",),
            vmem_limit_bytes=vmem_limit),
        cost_estimate=pl.CostEstimate(
            flops=2 * n_rows * width,
            transcendentals=0,
            bytes_accessed=n_rows * width * itemsize + 2 * width * 4),
    )(tab)

    # (n_rows, fold*dim) -> (padded_len, dim) is free (row-major contiguous);
    # slice off the padded rows.
    return out_folded.reshape(padded_len, dim)[:max_seq_len]


def rotary_embedding_ref(max_seq_len: int, dim: int):
    inv_freq = 1.0 / (10000.0 ** (jnp.arange(0, dim, 2, dtype=jnp.float32) / dim))
    seq = jnp.arange(max_seq_len, dtype=jnp.float32)
    freqs = jnp.einsum("i,j->ij", seq, inv_freq)
    return jnp.concatenate([freqs, freqs], axis=-1)


if __name__ == "__main__":
    # RotaryEmbedding.forward takes no tensor input, only max_seq_len; the
    # buffer is deterministic by construction. PRNGKey created per convention.
    _ = jax.random.PRNGKey(0)

    # Exercise: lane-folded path (8, 32), padded-fold path (10, 32),
    # lane-aligned dim with >=2 grid steps (16, 128), and a multi-step folded
    # table (2048, 64).
    for (S, D) in [(8, 32), (10, 32), (16, 128), (2048, 64)]:
        out = rotary_embedding(S, D)
        out = jax.block_until_ready(out)
        ref = rotary_embedding_ref(S, D)
        assert out.shape == (S, D), (S, D, out.shape)
        assert jnp.allclose(out, ref, atol=1e-5, rtol=1e-5), (S, D)

    print("KERNEL_OK")
</pallas_src>

<mosaic_0001>
module attributes {stable_mosaic.version = 11 : i64} {
  func.func @_rotary_kernel(%arg0: i32, %arg1: memref<2x128xf32, #tpu.memory_space<vmem>>, %arg2: memref<2x128xf32, #tpu.memory_space<vmem>>) attributes {dimension_semantics = [#tpu.dimension_semantics<parallel>], iteration_bounds = array<i64: 1>, scalar_prefetch = 0 : i64, scratch_operands = 0 : i64, tpu.core_type = #tpu.core_type<tc>, window_params = [{pipeline_mode = #tpu.pipeline_mode<synchronous>, transform_indices = @transform_0, window_bounds = array<i64: 2, 128>}, {transform_indices = @transform_1, window_bounds = array<i64: 2, 128>}]} {
    %c2_i32 = arith.constant 2 : i32
    %0 = arith.muli %arg0, %c2_i32 : i32
    %c4_i32 = arith.constant 4 : i32
    %1 = arith.muli %0, %c4_i32 : i32
    %c0 = arith.constant 0 : index
    %c0_0 = arith.constant 0 : index
    %2 = vector.load %arg1[%c0, %c0_0] : memref<2x128xf32, #tpu.memory_space<vmem>>, vector<1x128xf32>
    %c1 = arith.constant 1 : index
    %c0_1 = arith.constant 0 : index
    %3 = vector.load %arg1[%c1, %c0_1] : memref<2x128xf32, #tpu.memory_space<vmem>>, vector<1x128xf32>
    %4 = tpu.iota {dimensions = array<i32: 0>} : vector<2x1xi32>
    %c4_i32_2 = arith.constant 4 : i32
    %5 = vector.broadcast %c4_i32_2 : i32 to vector<2x1xi32>
    %6 = arith.muli %4, %5 : vector<2x1xi32>
    %7 = vector.broadcast %1 : i32 to vector<2x1xi32>
    %8 = arith.addi %7, %6 : vector<2x1xi32>
    %9 = arith.sitofp %8 : vector<2x1xi32> to vector<2x1xf32>
    %10 = vector.broadcast %9 : vector<2x1xf32> to vector<2x128xf32>
    %11 = vector.broadcast %2 : vector<1x128xf32> to vector<2x128xf32>
    %12 = arith.mulf %10, %11 : vector<2x128xf32>
    %13 = vector.broadcast %3 : vector<1x128xf32> to vector<2x128xf32>
    %14 = arith.addf %12, %13 : vector<2x128xf32>
    %c0_3 = arith.constant 0 : index
    %c0_4 = arith.constant 0 : index
    %15 = vector.load %arg2[%c0_3, %c0_4] : memref<2x128xf32, #tpu.memory_space<vmem>>, vector<2x128xf32>
    tpu.vector_store %arg2[%c0_3, %c0_4], %14 {strides = array<i32>} : memref<2x128xf32, #tpu.memory_space<vmem>>, vector<2x128xf32>,
    return
  }
  func.func @transform_0(%arg0: i32) -> (i32, i32) {
    %c0_i32 = arith.constant 0 : i32
    %c0_i32_0 = arith.constant 0 : i32
    %c0_i32_1 = arith.constant 0 : i32
    return %c0_i32, %c0_i32_0 : i32, i32
  }
  func.func @transform_1(%arg0: i32) -> (i32, i32) {
    %c0_i32 = arith.constant 0 : i32
    %c0_i32_0 = arith.constant 0 : i32
    return %arg0, %c0_i32 : i32, i32
  }
}

</mosaic_0001>

<llo_original>
// kernel: tpu_custom_call.1
$region0: #{tpu_custom_call.1}
  #allocation0 [shape = 'u32[]', space=smem, size = 0x4, offset = 0x4, fixed_abs, tag = 'smem constant byte address 0x4 - core index']
  #allocation1 [shape = 'u32[72,128]{1,0:T(1,128)}', space=vmem, size = 0x9000, scoped, tag = 'internal scratch']
  %s0 = inlined_call_operand.hbm [shape: f32[2,128], index: 0, kind: input, shape index: {}]
  %s1 = inlined_call_operand.hbm [shape: f32[2,128], index: 1, kind: output, shape index: {}]
  %s2 = sld [smem:[#allocation0]]
  $region18: #{tpu_custom_call.1} parent=0
    _
  %s4 = ssub.s32 1, %s2
  %s5 = scalar_select 0, %s4, %s2
  $region1: #{tpu_custom_call.1} parent=0
    #allocation2 [shape = 'u8[1024]{0}', space=vmem, size = 0x400, scoped, tag = 'input window, operand 0, single buffered']
    #allocation3 [shape = 's32[1]{0}', space=sflag, size = 0x4, scoped, tag = 'scoped memory for tpu_custom_call.1']
    #allocation4 [shape = 's32[1]{0}', space=sflag, size = 0x4, scoped, tag = 'scoped memory for tpu_custom_call.1']
    #allocation5 [shape = 'u8[1024]{0}', space=vmem, size = 0x400, scoped, tag = 'output window, operand 0, single buffered']
    %6 = vsyncpa [#allocation3], 0
    %7 = vsyncpa [#allocation4], 0
    // Predicated region
    $region2: #{tpu_custom_call.1} parent=1 // pred_check
      _
    $region3: #{tpu_custom_call.1} parent=1 // pred_check_branch
      %9 = sbr.rel (0) target = $region5
    $region4: #{tpu_custom_call.1} parent=1 // pred_region
      %11 = vsyncadd [#allocation3], 0
      %s13 = sshll.u32 %s0, 4
      %s14 = int_to_ptr.hbm [resolvable:$true] %s13
      %s15 = sshll.u32 [#allocation2], 4
      %s16 = int_to_ptr.vmem [resolvable:$true] %s15
      %18 = dma.hbm_to_vmem [thread:$0]  %s14, 32, %s16, [#allocation3]
    $region5: #{tpu_custom_call.1} parent=1 // pred_fallthru
      _
    // Predicated region
    $region6: #{tpu_custom_call.1} parent=1 // pred_check
      _
    $region7: #{tpu_custom_call.1} parent=1 // pred_check_branch
      %20 = sbr.rel (0) target = $region9
    $region8: #{tpu_custom_call.1} parent=1 // pred_region
      %22 = dma.done [#allocation3], 32
    $region9: #{tpu_custom_call.1} parent=1 // pred_fallthru
      _
    %s23 = smul.u32 0, 8
    %v24 = vld [vmem:[#allocation2] sm:$0x1]
    %v25 = vld [vmem:[#allocation2 + $0x1] sm:$0x1]
    %v26 = vlaneseq
    %v27 = vshrl.u32 %v26, 7
    %v28 = vmul.u32 %v27, 4
    %v29 = vstv %s23
    %v30 = vadd.s32 %v29, %v28
    %v31 = vcvt.s32.f32 %v30
    %v32 = vperm.slane %v24, 0
    %v33 = vmul.f32 %v31, %v32
    %v34 = vperm.slane %v25, 0
    %v35 = vadd.f32 %v33, %v34
    %36 = vst [vmem:[#allocation5] sm:$0x3] %v35
    // Predicated region
    $region10: #{tpu_custom_call.1} parent=1 // pred_check
      _
    $region11: #{tpu_custom_call.1} parent=1 // pred_check_branch
      %38 = sbr.rel (0) target = $region13
    $region12: #{tpu_custom_call.1} parent=1 // pred_region
      %40 = vsyncadd [#allocation4], 0
      %s42 = sshll.u32 [#allocation5], 4
      %s43 = int_to_ptr.vmem [resolvable:$true] %s42
      %s44 = sshll.u32 %s1, 4
      %s45 = int_to_ptr.hbm [resolvable:$true] %s44
      %47 = dma.vmem_to_hbm [thread:$0]  %s43, 32, %s45, [#allocation4]
    $region13: #{tpu_custom_call.1} parent=1 // pred_fallthru
      _
    // Predicated region
    $region14: #{tpu_custom_call.1} parent=1 // pred_check
      _
    $region15: #{tpu_custom_call.1} parent=1 // pred_check_branch
      %49 = sbr.rel (0) target = $region17
    $region16: #{tpu_custom_call.1} parent=1 // pred_region
      %51 = dma.done [#allocation4], 32
    $region17: #{tpu_custom_call.1} parent=1 // pred_fallthru
      _
    %52 = vsyncpa [#allocation3], 1
    %53 = vsyncpa [#allocation4], 1

</llo_original>
